<compile_context>
chip_gen: v5e
topology: v5e:2x2
jax: 0.10.0
libtpu: 0.0.40
codegen_flags: <defaults>
</compile_context>

<pallas_src>
import functools

import jax
import jax.numpy as jnp
from jax.experimental import pallas as pl
from jax.experimental.pallas import tpu as pltpu

SUBLANE = 8          # slow (second-last) axis of an f32 vreg
MAX_TILE_B = 1024    # upper bound on batch rows per grid step


def _round_up(n: int, m: int) -> int:
    return ((n + m - 1) // m) * m


# --------------------------------------------------------------------------
# Kernel body: one batch tile through the full 3-layer MLP, weights resident.
# Weights are bf16 (MXU-native); accumulation / bias / relu in f32.
# --------------------------------------------------------------------------
def _mlp_kernel(x_ref, w1_ref, b1_ref, w2_ref, b2_ref, w3_ref, b3_ref, o_ref):
    # layer 1: linear + relu
    h = jnp.dot(x_ref[...].astype(jnp.bfloat16), w1_ref[...],
                preferred_element_type=jnp.float32)
    h = jnp.maximum(h + b1_ref[...], 0.0)          # (1, H) bias -> row broadcast

    # layer 2: linear + relu
    h = jnp.dot(h.astype(jnp.bfloat16), w2_ref[...],
                preferred_element_type=jnp.float32)
    h = jnp.maximum(h + b2_ref[...], 0.0)

    # layer 3: linear (no activation)
    h = jnp.dot(h.astype(jnp.bfloat16), w3_ref[...],
                preferred_element_type=jnp.float32)
    o_ref[...] = (h + b3_ref[...]).astype(o_ref.dtype)


# --------------------------------------------------------------------------
# One-time parameter preparation: weights stored (in, out) and cast to bf16,
# biases reshaped to (1, N) and kept f32.  No feature padding.
# --------------------------------------------------------------------------
def prepare_params(params, weight_dtype=jnp.bfloat16):
    w1, b1, w2, b2, w3, b3 = params
    prep_b = lambda b: b.reshape(1, -1).astype(jnp.float32)
    return (w1.astype(weight_dtype), prep_b(b1),
            w2.astype(weight_dtype), prep_b(b2),
            w3.astype(weight_dtype), prep_b(b3))


# --------------------------------------------------------------------------
# Forward wrapper: 1-D grid over the batch, weights pinned in VMEM.
# Everything (tile selection, kernel call) lives inside one jit.
# --------------------------------------------------------------------------
@jax.jit
def number_pretrainer_forward(x, labels, prepared_params):
    """x: (B, input_size); labels ignored (matches the PyTorch forward)."""
    del labels  # unused in the reference forward
    w1, b1, w2, b2, w3, b3 = prepared_params
    B, input_size = x.shape
    hidden = w1.shape[1]
    hidden2 = w2.shape[1]

    # Batch tile: multiple of 8 sublanes, capped at MAX_TILE_B, and capped
    # near B/2 so larger batches produce >= 2 grid steps (v7x megacore).
    tile_b = min(MAX_TILE_B, _round_up(pl.cdiv(B, 2), SUBLANE))
    grid = (pl.cdiv(B, tile_b),)

    pinned = lambda r, c: pl.BlockSpec((r, c), lambda i: (0, 0))

    return pl.pallas_call(
        _mlp_kernel,
        out_shape=jax.ShapeDtypeStruct((B, hidden), jnp.float32),
        grid=grid,
        in_specs=[
            pl.BlockSpec((tile_b, input_size), lambda i: (i, 0)),  # x: batch-tiled
            pinned(input_size, hidden),  pinned(1, hidden),        # W1, b1 (resident)
            pinned(hidden, hidden2),     pinned(1, hidden2),       # W2, b2 (resident)
            pinned(hidden2, hidden),     pinned(1, hidden),        # W3, b3 (resident)
        ],
        out_specs=pl.BlockSpec((tile_b, hidden), lambda i: (i, 0)),
        compiler_params=pltpu.CompilerParams(
            dimension_semantics=("parallel",),   # batch axis -> megacore on v7x
            vmem_limit_bytes=32 << 20,
        ),
    )(x, w1, b1, w2, b2, w3, b3)


# --------------------------------------------------------------------------
# Init (nn.Linear-style uniform init; weights stored transposed as (in, out))
# and pure-JAX references for correctness checks.
# --------------------------------------------------------------------------
def init_params(key, input_size, hidden_size):
    ks = jax.random.split(key, 6)

    def uniform(k, shape, fan_in):
        bound = 1.0 / jnp.sqrt(fan_in)
        return jax.random.uniform(k, shape, jnp.float32, -bound, bound)

    w1 = uniform(ks[0], (input_size, hidden_size), input_size)
    b1 = uniform(ks[1], (hidden_size,), input_size)
    w2 = uniform(ks[2], (hidden_size, hidden_size * 2), hidden_size)
    b2 = uniform(ks[3], (hidden_size * 2,), hidden_size)
    w3 = uniform(ks[4], (hidden_size * 2, hidden_size), hidden_size * 2)
    b3 = uniform(ks[5], (hidden_size,), hidden_size * 2)
    return (w1, b1, w2, b2, w3, b3)


def reference_forward_f32(x, params):
    w1, b1, w2, b2, w3, b3 = params
    h = jax.nn.relu(x @ w1 + b1)
    h = jax.nn.relu(h @ w2 + b2)
    return h @ w3 + b3


def reference_forward_bf16(x, params):
    """Mirrors the kernel's numerics: bf16 matmul operands, f32 accumulation."""
    w1, b1, w2, b2, w3, b3 = params
    bf = jnp.bfloat16
    h = jnp.dot(x.astype(bf), w1.astype(bf), preferred_element_type=jnp.float32)
    h = jax.nn.relu(h + b1)
    h = jnp.dot(h.astype(bf), w2.astype(bf), preferred_element_type=jnp.float32)
    h = jax.nn.relu(h + b2)
    h = jnp.dot(h.astype(bf), w3.astype(bf), preferred_element_type=jnp.float32)
    return h + b3


if __name__ == "__main__":
    key = jax.random.PRNGKey(0)
    k_x, k_lbl, k_p, k_big = jax.random.split(key, 4)

    batch = 8
    input_size = 16
    hidden_size = 32

    params = init_params(k_p, input_size, hidden_size)
    prepared = prepare_params(params)

    # Small-shape check (matches the module's implied shapes).
    x = jax.random.normal(k_x, (batch, input_size), jnp.float32)
    labels = jax.random.normal(k_lbl, (batch, hidden_size), jnp.float32)  # unused
    out = jax.block_until_ready(number_pretrainer_forward(x, labels, prepared))
    assert out.shape == (batch, hidden_size)
    assert jnp.allclose(out, reference_forward_bf16(x, params),
                        atol=1e-3, rtol=1e-3), "small-batch mismatch (bf16 ref)"
    assert jnp.allclose(out, reference_forward_f32(x, params),
                        atol=1e-1, rtol=1e-1), "small-batch sanity mismatch (f32 ref)"

    # Larger, non-multiple batch: exercises >=2 grid steps (v7x megacore
    # split) and the masked last partial batch tile (no host-side padding).
    big_b = 300
    x_big = jax.random.normal(k_big, (big_b, input_size), jnp.float32)
    out_big = jax.block_until_ready(number_pretrainer_forward(x_big, None, prepared))
    assert out_big.shape == (big_b, hidden_size)
    assert jnp.allclose(out_big, reference_forward_bf16(x_big, params),
                        atol=1e-3, rtol=1e-3), "big-batch mismatch (bf16 ref)"

    print("KERNEL_OK")
</pallas_src>

<mosaic_0001>
module attributes {stable_mosaic.version = 11 : i64} {
  func.func @_mlp_kernel(%arg0: i32, %arg1: memref<8x16xf32, #tpu.memory_space<vmem>>, %arg2: memref<16x32xbf16, #tpu.memory_space<vmem>>, %arg3: memref<1x32xf32, #tpu.memory_space<vmem>>, %arg4: memref<32x64xbf16, #tpu.memory_space<vmem>>, %arg5: memref<1x64xf32, #tpu.memory_space<vmem>>, %arg6: memref<64x32xbf16, #tpu.memory_space<vmem>>, %arg7: memref<1x32xf32, #tpu.memory_space<vmem>>, %arg8: memref<8x32xf32, #tpu.memory_space<vmem>>) attributes {dimension_semantics = [#tpu.dimension_semantics<parallel>], iteration_bounds = array<i64: 1>, scalar_prefetch = 0 : i64, scratch_operands = 0 : i64, tpu.core_type = #tpu.core_type<tc>, window_params = [{transform_indices = @transform_0, window_bounds = array<i64: 8, 16>}, {pipeline_mode = #tpu.pipeline_mode<synchronous>, transform_indices = @transform_1, window_bounds = array<i64: 16, 32>}, {pipeline_mode = #tpu.pipeline_mode<synchronous>, transform_indices = @transform_2, window_bounds = array<i64: 1, 32>}, {pipeline_mode = #tpu.pipeline_mode<synchronous>, transform_indices = @transform_3, window_bounds = array<i64: 32, 64>}, {pipeline_mode = #tpu.pipeline_mode<synchronous>, transform_indices = @transform_4, window_bounds = array<i64: 1, 64>}, {pipeline_mode = #tpu.pipeline_mode<synchronous>, transform_indices = @transform_5, window_bounds = array<i64: 64, 32>}, {pipeline_mode = #tpu.pipeline_mode<synchronous>, transform_indices = @transform_6, window_bounds = array<i64: 1, 32>}, {transform_indices = @transform_7, window_bounds = array<i64: 8, 32>}]} {
    %c0 = arith.constant 0 : index
    %c0_0 = arith.constant 0 : index
    %0 = vector.load %arg1[%c0, %c0_0] : memref<8x16xf32, #tpu.memory_space<vmem>>, vector<8x16xf32>
    %1 = arith.truncf %0 : vector<8x16xf32> to vector<8x16xbf16>
    %c0_1 = arith.constant 0 : index
    %c0_2 = arith.constant 0 : index
    %2 = vector.load %arg2[%c0_1, %c0_2] : memref<16x32xbf16, #tpu.memory_space<vmem>>, vector<16x32xbf16>
    %cst = arith.constant dense<0.000000e+00> : vector<8x32xf32>
    %3 = tpu.matmul %1, %2, %cst {dimension_numbers = #tpu.dot_dimension_numbers<[1], [0], [0], [1], [0, 0, 1, 1], [], []>} : vector<8x16xbf16>, vector<16x32xbf16>, vector<8x32xf32> -> vector<8x32xf32>
    %c0_3 = arith.constant 0 : index
    %c0_4 = arith.constant 0 : index
    %4 = vector.load %arg3[%c0_3, %c0_4] : memref<1x32xf32, #tpu.memory_space<vmem>>, vector<1x32xf32>
    %5 = vector.broadcast %4 : vector<1x32xf32> to vector<8x32xf32>
    %6 = arith.addf %3, %5 : vector<8x32xf32>
    %cst_5 = arith.constant 0.000000e+00 : f32
    %7 = vector.broadcast %cst_5 : f32 to vector<8x32xf32>
    %8 = arith.maximumf %6, %7 : vector<8x32xf32>
    %9 = arith.truncf %8 : vector<8x32xf32> to vector<8x32xbf16>
    %c0_6 = arith.constant 0 : index
    %c0_7 = arith.constant 0 : index
    %10 = vector.load %arg4[%c0_6, %c0_7] : memref<32x64xbf16, #tpu.memory_space<vmem>>, vector<32x64xbf16>
    %cst_8 = arith.constant dense<0.000000e+00> : vector<8x64xf32>
    %11 = tpu.matmul %9, %10, %cst_8 {dimension_numbers = #tpu.dot_dimension_numbers<[1], [0], [0], [1], [0, 0, 1, 1], [], []>} : vector<8x32xbf16>, vector<32x64xbf16>, vector<8x64xf32> -> vector<8x64xf32>
    %c0_9 = arith.constant 0 : index
    %c0_10 = arith.constant 0 : index
    %12 = vector.load %arg5[%c0_9, %c0_10] : memref<1x64xf32, #tpu.memory_space<vmem>>, vector<1x64xf32>
    %13 = vector.broadcast %12 : vector<1x64xf32> to vector<8x64xf32>
    %14 = arith.addf %11, %13 : vector<8x64xf32>
    %cst_11 = arith.constant 0.000000e+00 : f32
    %15 = vector.broadcast %cst_11 : f32 to vector<8x64xf32>
    %16 = arith.maximumf %14, %15 : vector<8x64xf32>
    %17 = arith.truncf %16 : vector<8x64xf32> to vector<8x64xbf16>
    %c0_12 = arith.constant 0 : index
    %c0_13 = arith.constant 0 : index
    %18 = vector.load %arg6[%c0_12, %c0_13] : memref<64x32xbf16, #tpu.memory_space<vmem>>, vector<64x32xbf16>
    %cst_14 = arith.constant dense<0.000000e+00> : vector<8x32xf32>
    %19 = tpu.matmul %17, %18, %cst_14 {dimension_numbers = #tpu.dot_dimension_numbers<[1], [0], [0], [1], [0, 0, 1, 1], [], []>} : vector<8x64xbf16>, vector<64x32xbf16>, vector<8x32xf32> -> vector<8x32xf32>
    %c0_15 = arith.constant 0 : index
    %c0_16 = arith.constant 0 : index
    %20 = vector.load %arg7[%c0_15, %c0_16] : memref<1x32xf32, #tpu.memory_space<vmem>>, vector<1x32xf32>
    %21 = vector.broadcast %20 : vector<1x32xf32> to vector<8x32xf32>
    %22 = arith.addf %19, %21 : vector<8x32xf32>
    %c0_17 = arith.constant 0 : index
    %c0_18 = arith.constant 0 : index
    %23 = vector.load %arg8[%c0_17, %c0_18] : memref<8x32xf32, #tpu.memory_space<vmem>>, vector<8x32xf32>
    tpu.vector_store %arg8[%c0_17, %c0_18], %22 {strides = array<i32>} : memref<8x32xf32, #tpu.memory_space<vmem>>, vector<8x32xf32>,
    return
  }
  func.func @transform_0(%arg0: i32) -> (i32, i32) {
    %c0_i32 = arith.constant 0 : i32
    %c0_i32_0 = arith.constant 0 : i32
    return %arg0, %c0_i32 : i32, i32
  }
  func.func @transform_1(%arg0: i32) -> (i32, i32) {
    %c0_i32 = arith.constant 0 : i32
    %c0_i32_0 = arith.constant 0 : i32
    %c0_i32_1 = arith.constant 0 : i32
    return %c0_i32, %c0_i32_0 : i32, i32
  }
  func.func @transform_2(%arg0: i32) -> (i32, i32) {
    %c0_i32 = arith.constant 0 : i32
    %c0_i32_0 = arith.constant 0 : i32
    %c0_i32_1 = arith.constant 0 : i32
    return %c0_i32, %c0_i32_0 : i32, i32
  }
  func.func @transform_3(%arg0: i32) -> (i32, i32) {
    %c0_i32 = arith.constant 0 : i32
    %c0_i32_0 = arith.constant 0 : i32
    %c0_i32_1 = arith.constant 0 : i32
    return %c0_i32, %c0_i32_0 : i32, i32
  }
  func.func @transform_4(%arg0: i32) -> (i32, i32) {
    %c0_i32 = arith.constant 0 : i32
    %c0_i32_0 = arith.constant 0 : i32
    %c0_i32_1 = arith.constant 0 : i32
    return %c0_i32, %c0_i32_0 : i32, i32
  }
  func.func @transform_5(%arg0: i32) -> (i32, i32) {
    %c0_i32 = arith.constant 0 : i32
    %c0_i32_0 = arith.constant 0 : i32
    %c0_i32_1 = arith.constant 0 : i32
    return %c0_i32, %c0_i32_0 : i32, i32
  }
  func.func @transform_6(%arg0: i32) -> (i32, i32) {
    %c0_i32 = arith.constant 0 : i32
    %c0_i32_0 = arith.constant 0 : i32
    %c0_i32_1 = arith.constant 0 : i32
    return %c0_i32, %c0_i32_0 : i32, i32
  }
  func.func @transform_7(%arg0: i32) -> (i32, i32) {
    %c0_i32 = arith.constant 0 : i32
    %c0_i32_0 = arith.constant 0 : i32
    return %arg0, %c0_i32 : i32, i32
  }
}

</mosaic_0001>

<llo_original>
// kernel: number_pretrainer_forward.1
$region0: #{number_pretrainer_forward.1}
  #allocation0 [shape = 'u32[]', space=smem, size = 0x4, offset = 0x4, fixed_abs, tag = 'smem constant byte address 0x4 - core index']
  #allocation1 [shape = 'u32[72,128]{1,0:T(1,128)}', space=vmem, size = 0x9000, scoped, tag = 'internal scratch']
  %s0 = inlined_call_operand.vmem [shape: f32[8,16], index: 0, kind: input, shape index: {}]
  %s1 = inlined_call_operand.vmem [shape: bf16[16,32], index: 1, kind: input, shape index: {}]
  %s2 = inlined_call_operand.vmem [shape: f32[1,32], index: 2, kind: input, shape index: {}]
  %s3 = inlined_call_operand.vmem [shape: bf16[32,64], index: 3, kind: input, shape index: {}]
  %s4 = inlined_call_operand.vmem [shape: f32[1,64], index: 4, kind: input, shape index: {}]
  %s5 = inlined_call_operand.vmem [shape: bf16[64,32], index: 5, kind: input, shape index: {}]
  %s6 = inlined_call_operand.vmem [shape: f32[1,32], index: 6, kind: input, shape index: {}]
  %s7 = inlined_call_operand.hbm [shape: f32[8,32], index: 7, kind: output, shape index: {}]
  %s8 = sld [smem:[#allocation0]]
  $region38: #{number_pretrainer_forward.1} parent=0
    _
  %s10 = ssub.s32 1, %s8
  %s11 = scalar_select 0, %s10, %s8
  $region1: #{number_pretrainer_forward.1} parent=0
    #allocation2 [shape = 'u8[4096]{0}', space=vmem, size = 0x1000, scoped, tag = 'output window, operand 0, single buffered']
    #allocation3 [shape = 's32[1]{0}', space=sflag, size = 0x4, scoped, tag = 'scoped memory for number_pretrainer_forward.1']
    %12 = vsyncpa [#allocation3], 0
    // Predicated region
    $region2: #{number_pretrainer_forward.1} parent=1 // pred_check
      _
    $region3: #{number_pretrainer_forward.1} parent=1 // pred_check_branch
      %14 = sbr.rel (0) target = $region5
    $region4: #{number_pretrainer_forward.1} parent=1 // pred_region
      _
    $region5: #{number_pretrainer_forward.1} parent=1 // pred_fallthru
      _
    // Predicated region
    $region6: #{number_pretrainer_forward.1} parent=1 // pred_check
      _
    $region7: #{number_pretrainer_forward.1} parent=1 // pred_check_branch
      %16 = sbr.rel (0) target = $region9
    $region8: #{number_pretrainer_forward.1} parent=1 // pred_region
      _
    $region9: #{number_pretrainer_forward.1} parent=1 // pred_fallthru
      _
    // Predicated region
    $region10: #{number_pretrainer_forward.1} parent=1 // pred_check
      _
    $region11: #{number_pretrainer_forward.1} parent=1 // pred_check_branch
      %18 = sbr.rel (0) target = $region13
    $region12: #{number_pretrainer_forward.1} parent=1 // pred_region
      _
    $region13: #{number_pretrainer_forward.1} parent=1 // pred_fallthru
      _
    // Predicated region
    $region14: #{number_pretrainer_forward.1} parent=1 // pred_check
      _
    $region15: #{number_pretrainer_forward.1} parent=1 // pred_check_branch
      %20 = sbr.rel (0) target = $region17
    $region16: #{number_pretrainer_forward.1} parent=1 // pred_region
      _
    $region17: #{number_pretrainer_forward.1} parent=1 // pred_fallthru
      _
    // Predicated region
    $region18: #{number_pretrainer_forward.1} parent=1 // pred_check
      _
    $region19: #{number_pretrainer_forward.1} parent=1 // pred_check_branch
      %22 = sbr.rel (0) target = $region21
    $region20: #{number_pretrainer_forward.1} parent=1 // pred_region
      _
    $region21: #{number_pretrainer_forward.1} parent=1 // pred_fallthru
      _
    // Predicated region
    $region22: #{number_pretrainer_forward.1} parent=1 // pred_check
      _
    $region23: #{number_pretrainer_forward.1} parent=1 // pred_check_branch
      %24 = sbr.rel (0) target = $region25
    $region24: #{number_pretrainer_forward.1} parent=1 // pred_region
      _
    $region25: #{number_pretrainer_forward.1} parent=1 // pred_fallthru
      _
    // Predicated region
    $region26: #{number_pretrainer_forward.1} parent=1 // pred_check
      _
    $region27: #{number_pretrainer_forward.1} parent=1 // pred_check_branch
      %26 = sbr.rel (0) target = $region29
    $region28: #{number_pretrainer_forward.1} parent=1 // pred_region
      _
    $region29: #{number_pretrainer_forward.1} parent=1 // pred_fallthru
      _
    %v28 = vld [vmem:[%s0] sm:$0xff]
    %v29 = vpack.c.bf16 %v28, %v28
    %v30 = vld [vmem:[%s1] sm:$0xf]
    %v31 = vld [vmem:[%s1 + $0x4] sm:$0xf]
    %v32 = vld [vmem:[%s2] sm:$0x1]
    %v34 = vperm.slane %v32, 0
    %v38 = vunpack.c.l.b16 %v30
    %v39 = vunpack.c.l.b16 %v31
    %v40 = vpack.c.b16 %v39, %v38
    %vm42 = vcmask 130048
    %v44 = vsel %vm42, %v29, 0
    %46 = vmatpush.bf16.msra.mxu0 0
    %47 = vmatpush.bf16.msra.mxu0 0
    %48 = vmatpush.bf16.msra.mxu0 0
    %49 = vmatpush.bf16.msra.mxu0 0
    %50 = vmatpush.bf16.msra.mxu0 0
    %51 = vmatpush.bf16.msra.mxu0 0
    %52 = vmatpush.bf16.msra.mxu0 0
    %53 = vmatpush.bf16.msra.mxu0 %v40
    %54 = vmatmul.bf16.gmra.mxu0 %v44
    %v55 = vpop.f32.mrf.mxu0
    %v56 = vadd.f32 %v34, %v55
    %v57 = vpop.f32.mrf.mxu0
    %58 = vdwg.mxu0
    %v59 = vmax.f32 %v56, 0.0
    %v60 = vpack.c.bf16 %v59, %v59
    %v61 = vld [vmem:[%s3] sm:$0xf]
    %v62 = vld [vmem:[%s3 + $0x4] sm:$0xf]
    %v63 = vld [vmem:[%s3 + $0x8] sm:$0xf]
    %v64 = vld [vmem:[%s3 + $0xc] sm:$0xf]
    %v65 = vld [vmem:[%s4] sm:$0x1]
    %v67 = vperm.slane %v65, 0
    %v73 = vunpack.c.l.b16 %v61
    %v74 = vunpack.c.l.b16 %v62
    %v75 = vunpack.c.l.b16 %v63
    %v76 = vunpack.c.l.b16 %v64
    %v77 = vpack.c.b16 %v74, %v73
    %v78 = vpack.c.b16 %v76, %v75
    %vm81 = vcmask 261120
    %v83 = vsel %vm81, %v60, 0
    %85 = vmatpush.bf16.msra.mxu0 0
    %86 = vmatpush.bf16.msra.mxu0 0
    %87 = vmatpush.bf16.msra.mxu0 0
    %88 = vmatpush.bf16.msra.mxu0 0
    %89 = vmatpush.bf16.msra.mxu0 0
    %90 = vmatpush.bf16.msra.mxu0 0
    %91 = vmatpush.bf16.msra.mxu0 %v78
    %92 = vmatpush.bf16.msra.mxu0 %v77
    %93 = vmatmul.bf16.gmra.mxu0 %v83
    %v94 = vpop.f32.mrf.mxu0
    %v95 = vadd.f32 %v67, %v94
    %v96 = vpop.f32.mrf.mxu0
    %97 = vdwg.mxu0
    %v98 = vmax.f32 %v95, 0.0
    %v99 = vpack.c.bf16 %v98, %v98
    %v100 = vld [vmem:[%s5] sm:$0xf]
    %v101 = vld [vmem:[%s5 + $0x4] sm:$0xf]
    %v102 = vld [vmem:[%s5 + $0x8] sm:$0xf]
    %v103 = vld [vmem:[%s5 + $0xc] sm:$0xf]
    %v104 = vld [vmem:[%s5 + $0x10] sm:$0xf]
    %v105 = vld [vmem:[%s5 + $0x14] sm:$0xf]
    %v106 = vld [vmem:[%s5 + $0x18] sm:$0xf]
    %v107 = vld [vmem:[%s5 + $0x1c] sm:$0xf]
    %v108 = vld [vmem:[%s6] sm:$0x1]
    %v110 = vperm.slane %v108, 0
    %v120 = vunpack.c.l.b16 %v100
    %v121 = vunpack.c.l.b16 %v101
    %v122 = vunpack.c.l.b16 %v102
    %v123 = vunpack.c.l.b16 %v103
    %v124 = vunpack.c.l.b16 %v104
    %v125 = vunpack.c.l.b16 %v105
    %v126 = vunpack.c.l.b16 %v106
    %v127 = vunpack.c.l.b16 %v107
    %v128 = vpack.c.b16 %v121, %v120
    %v129 = vpack.c.b16 %v123, %v122
    %v130 = vpack.c.b16 %v125, %v124
    %v131 = vpack.c.b16 %v127, %v126
    %vm136 = vcmask 523264
    %v138 = vsel %vm136, %v99, 0
    %140 = vmatpush.bf16.msra.mxu0 0
    %141 = vmatpush.bf16.msra.mxu0 0
    %142 = vmatpush.bf16.msra.mxu0 0
    %143 = vmatpush.bf16.msra.mxu0 0
    %144 = vmatpush.bf16.msra.mxu0 %v131
    %145 = vmatpush.bf16.msra.mxu0 %v130
    %146 = vmatpush.bf16.msra.mxu0 %v129
    %147 = vmatpush.bf16.msra.mxu0 %v128
    %148 = vmatmul.bf16.gmra.mxu0 %v138
    %v149 = vpop.f32.mrf.mxu0
    %v150 = vadd.f32 %v110, %v149
    %v151 = vpop.f32.mrf.mxu0
    %152 = vdwg.mxu0
    %153 = vst.msk [vmem:[#allocation2] sm:$0xff] %vm81, %v150
    // Predicated region
    $region30: #{number_pretrainer_forward.1} parent=1 // pred_check
      _
    $region31: #{number_pretrainer_forward.1} parent=1 // pred_check_branch
      %155 = sbr.rel (0) target = $region33
    $region32: #{number_pretrainer_forward.1} parent=1 // pred_region
      %157 = vsyncadd [#allocation3], 0
      %s159 = sshll.u32 [#allocation2], 4
      %s160 = int_to_ptr.vmem [resolvable:$true] %s159
      %s161 = sshll.u32 %s7, 4
      %s162 = int_to_ptr.hbm [resolvable:$true] %s161
      %164 = dma.vmem_to_hbm [thread:$0]  %s160, 128, %s162, [#allocation3]
    $region33: #{number_pretrainer_forward.1} parent=1 // pred_fallthru
      _
    // Predicated region
    $region34: #{number_pretrainer_forward.1} parent=1 // pred_check
      _
    $region35: #{number_pretrainer_forward.1} parent=1 // pred_check_branch
      %166 = sbr.rel (0) target = $region37
    $region36: #{number_pretrainer_forward.1} parent=1 // pred_region
      %168 = dma.done [#allocation3], 128
    $region37: #{number_pretrainer_forward.1} parent=1 // pred_fallthru
      _
    %169 = vsyncpa [#allocation3], 1

</llo_original>
